<compile_context>
chip_gen: v5e
topology: v5e:2x2
jax: 0.10.0
libtpu: 0.0.40
codegen_flags: <defaults>
</compile_context>

<pallas_src>
import functools

import jax
import jax.numpy as jnp
from jax.experimental import pallas as pl
from jax.experimental.pallas import tpu as pltpu

EPS = 1e-5  # InstanceNorm1d default eps


def _decoder_block_kernel(x_ref, m_ref, wd_ref, wpw_ref, b_ref, o_ref,
                          *, batch, seq_len, dilation_rate):
    X = x_ref[...]           # [C, B*T]  (batch segments side-by-side in the lane dim)
    m = m_ref[...]           # [1, B*T]  (masks[:, 0:1, :] flattened the same way)
    C, N = X.shape
    T = seq_len
    d = dilation_rate
    inv_t = 1.0 / T

    def inorm(v):
        # Two-pass per-(channel, batch-segment) InstanceNorm (biased var, eps=1e-5).
        # Segment slices start at multiples of T=128 lanes -> aligned views.
        segs = []
        for b in range(batch):
            seg = v[:, b * T:(b + 1) * T]
            mean = jnp.sum(seg, axis=1, keepdims=True) * inv_t
            cen = seg - mean
            var = jnp.sum(cen * cen, axis=1, keepdims=True) * inv_t
            segs.append(cen * jax.lax.rsqrt(var + EPS))
        return jnp.concatenate(segs, axis=1)

    # ---------------- dilated-conv branch ----------------
    xn = inorm(X)

    # local (within-segment) time index for shift masking
    gidx = jax.lax.broadcasted_iota(jnp.int32, (1, N), 1)
    t_idx = jax.lax.rem(gidx, T)
    # x_m[c,t] = xn[c,t-d] (0 for t<d);  x_p[c,t] = xn[c,t+d] (0 for t>=T-d), per segment.
    x_m = jnp.where(t_idx >= d, pltpu.roll(xn, shift=d, axis=1), 0.0)
    x_p = jnp.where(t_idx < T - d, pltpu.roll(xn, shift=(N - d) % N, axis=1), 0.0)

    xs = jnp.concatenate([x_m, xn, x_p], axis=0)                  # [3C, N]

    bd = b_ref[:, 0:1]
    bp = b_ref[:, 1:2]
    b1 = b_ref[:, 2:3]
    b2 = b_ref[:, 3:4]
    mm_dt = wd_ref.dtype   # cast activations only at the dot boundary (no-op for f32)

    h = jnp.dot(wd_ref[...], xs.astype(mm_dt),
                preferred_element_type=jnp.float32) + bd
    h = jnp.maximum(h, 0.0)                                       # ReLU
    c = jnp.dot(wpw_ref[0], h.astype(mm_dt),
                preferred_element_type=jnp.float32) + bp
    out1 = c * m + xn                                             # mask, residual to xn

    # ---------------- FFN (Mlp with 1x1 convs) branch ----------------
    on = inorm(out1)
    h2 = jnp.dot(wpw_ref[1], on.astype(mm_dt),
                 preferred_element_type=jnp.float32) + b1
    h2 = h2 * jax.nn.sigmoid(h2)                                  # SiLU
    f = jnp.dot(wpw_ref[2], h2.astype(mm_dt),
                preferred_element_type=jnp.float32) + b2

    o_ref[...] = (f + out1) * m


def mix_token_former_decoder_block(x, value, masks, params, dilation=3,
                                   matmul_dtype=jnp.float32):
    """x: [B, C, T], value: unused (matches PyTorch), masks: [B, 1, T] -> [B, C, T]."""
    del value  # the PyTorch forward ignores `value`
    B, C, T = x.shape
    d = 2 ** dilation
    f32 = jnp.float32

    # ---- weight packing (5 kernel inputs total) ----
    wd = params["wd"].astype(matmul_dtype)                              # [C, C, 3]
    # fold the 3 conv taps into one [C, 3C] matrix -> single MXU matmul in-kernel
    wd_cat = jnp.concatenate([wd[:, :, 0], wd[:, :, 1], wd[:, :, 2]], axis=1)
    w_pw = jnp.stack([params["wp"], params["w1f"], params["w2f"]],
                     axis=0).astype(matmul_dtype)                       # [3, C, C]
    b_all = jnp.stack([params["bd"], params["bp"], params["b1f"], params["b2f"]],
                      axis=1).astype(f32)                               # [C, 4]

    # ---- activation layout plumbing: [B, C, T] -> [C, B*T] (lane-dense, 256 wide) ----
    x_flat = jnp.transpose(x.astype(f32), (1, 0, 2)).reshape(C, B * T)
    m_flat = masks.astype(f32)[:, 0, :].reshape(1, B * T)

    kernel = functools.partial(_decoder_block_kernel,
                               batch=B, seq_len=T, dilation_rate=d)

    # advisory cost hint: 6 CxC-equivalent matmuls over B*T columns + SiLU sigmoid
    cost = pl.CostEstimate(
        flops=int(12 * C * C * B * T),
        transcendentals=int(C * B * T),
        bytes_accessed=int(4 * (2 * C * B * T + B * T + 6 * C * C + 4 * C)),
    )

    vmem_spec = pl.BlockSpec(memory_space=pltpu.MemorySpace.VMEM)

    out_flat = pl.pallas_call(
        kernel,
        out_shape=jax.ShapeDtypeStruct((C, B * T), f32),
        in_specs=[vmem_spec] * 5,
        out_specs=vmem_spec,
        cost_estimate=cost,
    )(x_flat, m_flat, wd_cat, w_pw, b_all)

    return jnp.transpose(out_flat.reshape(C, B, T), (1, 0, 2))


# ---------------- pure-JAX reference (follows the PyTorch code literally) ----
def _ref_forward(x, masks, p, dilation_rate):
    B, C, T = x.shape
    d = dilation_rate
    m = masks[:, 0:1, :]

    def inorm(v):
        mean = v.mean(axis=2, keepdims=True)
        var = ((v - mean) ** 2).mean(axis=2, keepdims=True)
        return (v - mean) / jnp.sqrt(var + EPS)

    xn = inorm(x)
    xp = jnp.pad(xn, ((0, 0), (0, 0), (d, d)))         # Conv1d padding = dilation rate
    h = (jnp.einsum("oc,bct->bot", p["wd"][:, :, 0], xp[:, :, 0:T])
         + jnp.einsum("oc,bct->bot", p["wd"][:, :, 1], xp[:, :, d:d + T])
         + jnp.einsum("oc,bct->bot", p["wd"][:, :, 2], xp[:, :, 2 * d:2 * d + T])
         + p["bd"][None, :, None])
    h = jnp.maximum(h, 0.0)
    c = jnp.einsum("oc,bct->bot", p["wp"], h) + p["bp"][None, :, None]
    out = c * m + xn

    on = inorm(out)
    h2 = jnp.einsum("oc,bct->bot", p["w1f"], on) + p["b1f"][None, :, None]
    h2 = h2 * jax.nn.sigmoid(h2)
    f = jnp.einsum("oc,bct->bot", p["w2f"], h2) + p["b2f"][None, :, None]
    out = f + out
    return out * m


def _make_params(key, C):
    ks = jax.random.split(key, 8)
    scale = 0.2
    return {
        "wd": scale * jax.random.normal(ks[0], (C, C, 3), jnp.float32),   # Conv1d(C,C,3,dil=8)
        "bd": scale * jax.random.normal(ks[1], (C,), jnp.float32),
        "bp": scale * jax.random.normal(ks[3], (C,), jnp.float32),
        "wp": scale * jax.random.normal(ks[2], (C, C), jnp.float32),      # Conv1d(C,C,1)
        "w1f": scale * jax.random.normal(ks[4], (C, C), jnp.float32),     # Mlp.fc1
        "b1f": scale * jax.random.normal(ks[5], (C,), jnp.float32),
        "w2f": scale * jax.random.normal(ks[6], (C, C), jnp.float32),     # Mlp.fc2
        "b2f": scale * jax.random.normal(ks[7], (C,), jnp.float32),
    }


if __name__ == "__main__":
    B, C, T = 2, 32, 128         # dim=32; T multiple of 128 -> lane-dense (B*T=256 wide) slab
    dilation = 3                 # module default -> dilation rate 8, padding 8

    key = jax.random.PRNGKey(0)
    kx, kv, kp = jax.random.split(key, 3)
    x = jax.random.normal(kx, (B, C, T), jnp.float32)
    value = jax.random.normal(kv, (B, C, T), jnp.float32)   # unused by the module's forward
    masks = jnp.ones((B, 1, T), jnp.float32)
    masks = masks.at[1, 0, 96:].set(0.0)                    # mask last 32 frames of batch 1

    params = _make_params(kp, C)

    out = mix_token_former_decoder_block(x, value, masks, params, dilation=dilation)
    out = jax.block_until_ready(out)

    ref = _ref_forward(x, masks, params, 2 ** dilation)
    ref = jax.block_until_ready(ref)

    assert out.shape == (B, C, T)
    max_err = float(jnp.max(jnp.abs(out - ref)))
    assert jnp.allclose(out, ref, atol=2e-4, rtol=2e-4), max_err

    print("KERNEL_OK")
</pallas_src>

<mosaic_0001>
module attributes {stable_mosaic.version = 11 : i64} {
  func.func @_decoder_block_kernel(%arg0: memref<32x256xf32, #tpu.memory_space<vmem>>, %arg1: memref<1x256xf32, #tpu.memory_space<vmem>>, %arg2: memref<32x96xf32, #tpu.memory_space<vmem>>, %arg3: memref<3x32x32xf32, #tpu.memory_space<vmem>>, %arg4: memref<32x4xf32, #tpu.memory_space<vmem>>, %arg5: memref<32x256xf32, #tpu.memory_space<vmem>>) attributes {dimension_semantics = [], scalar_prefetch = 0 : i64, scratch_operands = 0 : i64, tpu.core_type = #tpu.core_type<tc>} {
    %c0 = arith.constant 0 : index
    %c0_0 = arith.constant 0 : index
    %0 = vector.load %arg0[%c0, %c0_0] : memref<32x256xf32, #tpu.memory_space<vmem>>, vector<32x256xf32>
    %c0_1 = arith.constant 0 : index
    %c0_2 = arith.constant 0 : index
    %1 = vector.load %arg1[%c0_1, %c0_2] : memref<1x256xf32, #tpu.memory_space<vmem>>, vector<1x256xf32>
    %2 = vector.extract_strided_slice %0 {offsets = [0, 0], sizes = [32, 128], strides = [1, 1]} : vector<32x256xf32> to vector<32x128xf32>
    %cst = arith.constant dense<0.000000e+00> : vector<32xf32>
    %3 = vector.multi_reduction <add>, %2, %cst [1] : vector<32x128xf32> to vector<32xf32>
    %4 = vector.shape_cast %3 : vector<32xf32> to vector<32x1xf32>
    %cst_3 = arith.constant 7.812500e-03 : f32
    %5 = vector.broadcast %cst_3 : f32 to vector<32x1xf32>
    %6 = arith.mulf %4, %5 : vector<32x1xf32>
    %7 = vector.broadcast %6 : vector<32x1xf32> to vector<32x128xf32>
    %8 = arith.subf %2, %7 : vector<32x128xf32>
    %9 = arith.mulf %8, %8 : vector<32x128xf32>
    %cst_4 = arith.constant dense<0.000000e+00> : vector<32xf32>
    %10 = vector.multi_reduction <add>, %9, %cst_4 [1] : vector<32x128xf32> to vector<32xf32>
    %11 = vector.shape_cast %10 : vector<32xf32> to vector<32x1xf32>
    %cst_5 = arith.constant 7.812500e-03 : f32
    %12 = vector.broadcast %cst_5 : f32 to vector<32x1xf32>
    %13 = arith.mulf %11, %12 : vector<32x1xf32>
    %cst_6 = arith.constant 9.99999974E-6 : f32
    %14 = vector.broadcast %cst_6 : f32 to vector<32x1xf32>
    %15 = arith.addf %13, %14 : vector<32x1xf32>
    %16 = math.rsqrt %15 : vector<32x1xf32>
    %17 = vector.broadcast %16 : vector<32x1xf32> to vector<32x128xf32>
    %18 = arith.mulf %8, %17 : vector<32x128xf32>
    %19 = vector.extract_strided_slice %0 {offsets = [0, 128], sizes = [32, 128], strides = [1, 1]} : vector<32x256xf32> to vector<32x128xf32>
    %cst_7 = arith.constant dense<0.000000e+00> : vector<32xf32>
    %20 = vector.multi_reduction <add>, %19, %cst_7 [1] : vector<32x128xf32> to vector<32xf32>
    %21 = vector.shape_cast %20 : vector<32xf32> to vector<32x1xf32>
    %cst_8 = arith.constant 7.812500e-03 : f32
    %22 = vector.broadcast %cst_8 : f32 to vector<32x1xf32>
    %23 = arith.mulf %21, %22 : vector<32x1xf32>
    %24 = vector.broadcast %23 : vector<32x1xf32> to vector<32x128xf32>
    %25 = arith.subf %19, %24 : vector<32x128xf32>
    %26 = arith.mulf %25, %25 : vector<32x128xf32>
    %cst_9 = arith.constant dense<0.000000e+00> : vector<32xf32>
    %27 = vector.multi_reduction <add>, %26, %cst_9 [1] : vector<32x128xf32> to vector<32xf32>
    %28 = vector.shape_cast %27 : vector<32xf32> to vector<32x1xf32>
    %cst_10 = arith.constant 7.812500e-03 : f32
    %29 = vector.broadcast %cst_10 : f32 to vector<32x1xf32>
    %30 = arith.mulf %28, %29 : vector<32x1xf32>
    %cst_11 = arith.constant 9.99999974E-6 : f32
    %31 = vector.broadcast %cst_11 : f32 to vector<32x1xf32>
    %32 = arith.addf %30, %31 : vector<32x1xf32>
    %33 = math.rsqrt %32 : vector<32x1xf32>
    %34 = vector.broadcast %33 : vector<32x1xf32> to vector<32x128xf32>
    %35 = arith.mulf %25, %34 : vector<32x128xf32>
    %36 = tpu.concatenate %18, %35 in 1 : vector<32x128xf32>, vector<32x128xf32> -> vector<32x256xf32>
    %37 = tpu.iota {dimensions = array<i32: 1>} : vector<1x256xi32>
    %c128_i32 = arith.constant 128 : i32
    %38 = vector.broadcast %c128_i32 : i32 to vector<1x256xi32>
    %39 = arith.remsi %37, %38 : vector<1x256xi32>
    %c8_i32 = arith.constant 8 : i32
    %40 = vector.broadcast %c8_i32 : i32 to vector<1x256xi32>
    %41 = arith.cmpi sge, %39, %40 : vector<1x256xi32>
    %c8_i32_12 = arith.constant 8 : i32
    %42 = tpu.dynamic_rotate %36 by %c8_i32_12 dim 1 : vector<32x256xf32>, i32 -> vector<32x256xf32>
    %cst_13 = arith.constant 0.000000e+00 : f32
    %43 = vector.shape_cast %41 : vector<1x256xi1> to vector<1x256xi1>
    %44 = vector.broadcast %43 : vector<1x256xi1> to vector<32x256xi1>
    %45 = vector.broadcast %cst_13 : f32 to vector<32x256xf32>
    %46 = arith.select %44, %42, %45 : vector<32x256xi1>, vector<32x256xf32>
    %c120_i32 = arith.constant 120 : i32
    %47 = vector.broadcast %c120_i32 : i32 to vector<1x256xi32>
    %48 = arith.cmpi slt, %39, %47 : vector<1x256xi32>
    %c248_i32 = arith.constant 248 : i32
    %49 = tpu.dynamic_rotate %36 by %c248_i32 dim 1 : vector<32x256xf32>, i32 -> vector<32x256xf32>
    %cst_14 = arith.constant 0.000000e+00 : f32
    %50 = vector.shape_cast %48 : vector<1x256xi1> to vector<1x256xi1>
    %51 = vector.broadcast %50 : vector<1x256xi1> to vector<32x256xi1>
    %52 = vector.broadcast %cst_14 : f32 to vector<32x256xf32>
    %53 = arith.select %51, %49, %52 : vector<32x256xi1>, vector<32x256xf32>
    %54 = tpu.concatenate %46, %36, %53 in 0 : vector<32x256xf32>, vector<32x256xf32>, vector<32x256xf32> -> vector<96x256xf32>
    %c0_15 = arith.constant 0 : index
    %c0_16 = arith.constant 0 : index
    %55 = vector.load %arg4[%c0_15, %c0_16] : memref<32x4xf32, #tpu.memory_space<vmem>>, vector<32x1xf32>
    %c0_17 = arith.constant 0 : index
    %c1 = arith.constant 1 : index
    %56 = vector.load %arg4[%c0_17, %c1] : memref<32x4xf32, #tpu.memory_space<vmem>>, vector<32x1xf32>
    %c0_18 = arith.constant 0 : index
    %c2 = arith.constant 2 : index
    %57 = vector.load %arg4[%c0_18, %c2] : memref<32x4xf32, #tpu.memory_space<vmem>>, vector<32x1xf32>
    %c0_19 = arith.constant 0 : index
    %c3 = arith.constant 3 : index
    %58 = vector.load %arg4[%c0_19, %c3] : memref<32x4xf32, #tpu.memory_space<vmem>>, vector<32x1xf32>
    %c0_20 = arith.constant 0 : index
    %c0_21 = arith.constant 0 : index
    %59 = vector.load %arg2[%c0_20, %c0_21] : memref<32x96xf32, #tpu.memory_space<vmem>>, vector<32x96xf32>
    %cst_22 = arith.constant dense<0.000000e+00> : vector<32x256xf32>
    %60 = tpu.matmul %59, %54, %cst_22 {dimension_numbers = #tpu.dot_dimension_numbers<[1], [0], [0], [1], [0, 0, 1, 1], [], []>} : vector<32x96xf32>, vector<96x256xf32>, vector<32x256xf32> -> vector<32x256xf32>
    %61 = vector.broadcast %55 : vector<32x1xf32> to vector<32x256xf32>
    %62 = arith.addf %60, %61 : vector<32x256xf32>
    %cst_23 = arith.constant 0.000000e+00 : f32
    %63 = vector.broadcast %cst_23 : f32 to vector<32x256xf32>
    %64 = arith.maximumf %62, %63 : vector<32x256xf32>
    %c0_24 = arith.constant 0 : index
    %c0_25 = arith.constant 0 : index
    %c0_26 = arith.constant 0 : index
    %65 = vector.load %arg3[%c0_24, %c0_25, %c0_26] : memref<3x32x32xf32, #tpu.memory_space<vmem>>, vector<1x32x32xf32>
    %66 = vector.shape_cast %65 : vector<1x32x32xf32> to vector<32x32xf32>
    %cst_27 = arith.constant dense<0.000000e+00> : vector<32x256xf32>
    %67 = tpu.matmul %66, %64, %cst_27 {dimension_numbers = #tpu.dot_dimension_numbers<[1], [0], [0], [1], [0, 0, 1, 1], [], []>} : vector<32x32xf32>, vector<32x256xf32>, vector<32x256xf32> -> vector<32x256xf32>
    %68 = vector.broadcast %56 : vector<32x1xf32> to vector<32x256xf32>
    %69 = arith.addf %67, %68 : vector<32x256xf32>
    %70 = vector.broadcast %1 : vector<1x256xf32> to vector<32x256xf32>
    %71 = arith.mulf %69, %70 : vector<32x256xf32>
    %72 = arith.addf %71, %36 : vector<32x256xf32>
    %73 = vector.extract_strided_slice %72 {offsets = [0, 0], sizes = [32, 128], strides = [1, 1]} : vector<32x256xf32> to vector<32x128xf32>
    %cst_28 = arith.constant dense<0.000000e+00> : vector<32xf32>
    %74 = vector.multi_reduction <add>, %73, %cst_28 [1] : vector<32x128xf32> to vector<32xf32>
    %75 = vector.shape_cast %74 : vector<32xf32> to vector<32x1xf32>
    %cst_29 = arith.constant 7.812500e-03 : f32
    %76 = vector.broadcast %cst_29 : f32 to vector<32x1xf32>
    %77 = arith.mulf %75, %76 : vector<32x1xf32>
    %78 = vector.broadcast %77 : vector<32x1xf32> to vector<32x128xf32>
    %79 = arith.subf %73, %78 : vector<32x128xf32>
    %80 = arith.mulf %79, %79 : vector<32x128xf32>
    %cst_30 = arith.constant dense<0.000000e+00> : vector<32xf32>
    %81 = vector.multi_reduction <add>, %80, %cst_30 [1] : vector<32x128xf32> to vector<32xf32>
    %82 = vector.shape_cast %81 : vector<32xf32> to vector<32x1xf32>
    %cst_31 = arith.constant 7.812500e-03 : f32
    %83 = vector.broadcast %cst_31 : f32 to vector<32x1xf32>
    %84 = arith.mulf %82, %83 : vector<32x1xf32>
    %cst_32 = arith.constant 9.99999974E-6 : f32
    %85 = vector.broadcast %cst_32 : f32 to vector<32x1xf32>
    %86 = arith.addf %84, %85 : vector<32x1xf32>
    %87 = math.rsqrt %86 : vector<32x1xf32>
    %88 = vector.broadcast %87 : vector<32x1xf32> to vector<32x128xf32>
    %89 = arith.mulf %79, %88 : vector<32x128xf32>
    %90 = vector.extract_strided_slice %72 {offsets = [0, 128], sizes = [32, 128], strides = [1, 1]} : vector<32x256xf32> to vector<32x128xf32>
    %cst_33 = arith.constant dense<0.000000e+00> : vector<32xf32>
    %91 = vector.multi_reduction <add>, %90, %cst_33 [1] : vector<32x128xf32> to vector<32xf32>
    %92 = vector.shape_cast %91 : vector<32xf32> to vector<32x1xf32>
    %cst_34 = arith.constant 7.812500e-03 : f32
    %93 = vector.broadcast %cst_34 : f32 to vector<32x1xf32>
    %94 = arith.mulf %92, %93 : vector<32x1xf32>
    %95 = vector.broadcast %94 : vector<32x1xf32> to vector<32x128xf32>
    %96 = arith.subf %90, %95 : vector<32x128xf32>
    %97 = arith.mulf %96, %96 : vector<32x128xf32>
    %cst_35 = arith.constant dense<0.000000e+00> : vector<32xf32>
    %98 = vector.multi_reduction <add>, %97, %cst_35 [1] : vector<32x128xf32> to vector<32xf32>
    %99 = vector.shape_cast %98 : vector<32xf32> to vector<32x1xf32>
    %cst_36 = arith.constant 7.812500e-03 : f32
    %100 = vector.broadcast %cst_36 : f32 to vector<32x1xf32>
    %101 = arith.mulf %99, %100 : vector<32x1xf32>
    %cst_37 = arith.constant 9.99999974E-6 : f32
    %102 = vector.broadcast %cst_37 : f32 to vector<32x1xf32>
    %103 = arith.addf %101, %102 : vector<32x1xf32>
    %104 = math.rsqrt %103 : vector<32x1xf32>
    %105 = vector.broadcast %104 : vector<32x1xf32> to vector<32x128xf32>
    %106 = arith.mulf %96, %105 : vector<32x128xf32>
    %107 = tpu.concatenate %89, %106 in 1 : vector<32x128xf32>, vector<32x128xf32> -> vector<32x256xf32>
    %c1_38 = arith.constant 1 : index
    %c0_39 = arith.constant 0 : index
    %c0_40 = arith.constant 0 : index
    %108 = vector.load %arg3[%c1_38, %c0_39, %c0_40] : memref<3x32x32xf32, #tpu.memory_space<vmem>>, vector<1x32x32xf32>
    %109 = vector.shape_cast %108 : vector<1x32x32xf32> to vector<32x32xf32>
    %cst_41 = arith.constant dense<0.000000e+00> : vector<32x256xf32>
    %110 = tpu.matmul %109, %107, %cst_41 {dimension_numbers = #tpu.dot_dimension_numbers<[1], [0], [0], [1], [0, 0, 1, 1], [], []>} : vector<32x32xf32>, vector<32x256xf32>, vector<32x256xf32> -> vector<32x256xf32>
    %111 = vector.broadcast %57 : vector<32x1xf32> to vector<32x256xf32>
    %112 = arith.addf %110, %111 : vector<32x256xf32>
    %113 = arith.negf %112 : vector<32x256xf32>
    %114 = math.exp %113 : vector<32x256xf32>
    %cst_42 = arith.constant 1.000000e+00 : f32
    %115 = vector.broadcast %cst_42 : f32 to vector<32x256xf32>
    %116 = arith.addf %115, %114 : vector<32x256xf32>
    %117 = arith.divf %115, %116 : vector<32x256xf32>
    %118 = arith.mulf %112, %117 : vector<32x256xf32>
    %c2_43 = arith.constant 2 : index
    %c0_44 = arith.constant 0 : index
    %c0_45 = arith.constant 0 : index
    %119 = vector.load %arg3[%c2_43, %c0_44, %c0_45] : memref<3x32x32xf32, #tpu.memory_space<vmem>>, vector<1x32x32xf32>
    %120 = vector.shape_cast %119 : vector<1x32x32xf32> to vector<32x32xf32>
    %cst_46 = arith.constant dense<0.000000e+00> : vector<32x256xf32>
    %121 = tpu.matmul %120, %118, %cst_46 {dimension_numbers = #tpu.dot_dimension_numbers<[1], [0], [0], [1], [0, 0, 1, 1], [], []>} : vector<32x32xf32>, vector<32x256xf32>, vector<32x256xf32> -> vector<32x256xf32>
    %122 = vector.broadcast %58 : vector<32x1xf32> to vector<32x256xf32>
    %123 = arith.addf %121, %122 : vector<32x256xf32>
    %124 = arith.addf %123, %72 : vector<32x256xf32>
    %125 = vector.broadcast %1 : vector<1x256xf32> to vector<32x256xf32>
    %126 = arith.mulf %124, %125 : vector<32x256xf32>
    %c0_47 = arith.constant 0 : index
    %c0_48 = arith.constant 0 : index
    %127 = vector.load %arg5[%c0_47, %c0_48] : memref<32x256xf32, #tpu.memory_space<vmem>>, vector<32x256xf32>
    tpu.vector_store %arg5[%c0_47, %c0_48], %126 {strides = array<i32>} : memref<32x256xf32, #tpu.memory_space<vmem>>, vector<32x256xf32>,
    return
  }
}

</mosaic_0001>

<llo_original>
// kernel: tpu_custom_call.1
$region0: #{tpu_custom_call.1}
  #allocation0 [shape = 'u32[]', space=smem, size = 0x4, offset = 0x4, fixed_abs, tag = 'smem constant byte address 0x4 - core index']
  #allocation1 [shape = 'u32[72,128]{1,0:T(1,128)}', space=vmem, size = 0x9000, scoped, tag = 'internal scratch']
  %s0 = inlined_call_operand.hbm [shape: f32[32,256], index: 0, kind: input, shape index: {}]
  %s1 = inlined_call_operand.vmem [shape: f32[1,256], index: 1, kind: input, shape index: {}]
  %s2 = inlined_call_operand.vmem [shape: f32[32,96], index: 2, kind: input, shape index: {}]
  %s3 = inlined_call_operand.hbm [shape: f32[3,32,32], index: 3, kind: input, shape index: {}]
  %s4 = inlined_call_operand.vmem [shape: f32[32,4], index: 4, kind: input, shape index: {}]
  %s5 = inlined_call_operand.hbm [shape: f32[32,256], index: 5, kind: output, shape index: {}]
  %s6 = sld [smem:[#allocation0]]
  $region38: #{tpu_custom_call.1} parent=0
    _
  %s8 = ssub.s32 1, %s6
  %s9 = scalar_select 0, %s8, %s6
  $region1: #{tpu_custom_call.1} parent=0
    #allocation2 [shape = 'u8[32768]{0}', space=vmem, size = 0x8000, scoped, tag = 'input window, operand 0, single buffered']
    #allocation3 [shape = 's32[1]{0}', space=sflag, size = 0x4, scoped, tag = 'scoped memory for tpu_custom_call.1']
    #allocation4 [shape = 's32[1]{0}', space=sflag, size = 0x4, scoped, tag = 'scoped memory for tpu_custom_call.1']
    #allocation5 [shape = 'u8[49152]{0}', space=vmem, size = 0xc000, scoped, tag = 'input window, operand 3, single buffered']
    #allocation6 [shape = 's32[1]{0}', space=sflag, size = 0x4, scoped, tag = 'scoped memory for tpu_custom_call.1']
    #allocation7 [shape = 'u8[32768]{0}', space=vmem, size = 0x8000, scoped, tag = 'output window, operand 0, single buffered']
    %10 = vsyncpa [#allocation3], 0
    %11 = vsyncpa [#allocation6], 0
    %12 = vsyncpa [#allocation4], 0
    // Predicated region
    $region2: #{tpu_custom_call.1} parent=1 // pred_check
      _
    $region3: #{tpu_custom_call.1} parent=1 // pred_check_branch
      %14 = sbr.rel (0) target = $region5
    $region4: #{tpu_custom_call.1} parent=1 // pred_region
      %16 = vsyncadd [#allocation3], 0
      %s17 = sshll.u32 %s0, 4
      %s18 = int_to_ptr.hbm [resolvable:$true] %s17
      %s19 = sshll.u32 [#allocation2], 4
      %s20 = int_to_ptr.vmem [resolvable:$true] %s19
      %25 = dma.hbm_to_vmem [thread:$0]  %s18, 1024, %s20, [#allocation3], 256, 256, 16
    $region5: #{tpu_custom_call.1} parent=1 // pred_fallthru
      _
    // Predicated region
    $region6: #{tpu_custom_call.1} parent=1 // pred_check
      _
    $region7: #{tpu_custom_call.1} parent=1 // pred_check_branch
      %27 = sbr.rel (0) target = $region9
    $region8: #{tpu_custom_call.1} parent=1 // pred_region
      _
    $region9: #{tpu_custom_call.1} parent=1 // pred_fallthru
      _
    // Predicated region
    $region10: #{tpu_custom_call.1} parent=1 // pred_check
      _
    $region11: #{tpu_custom_call.1} parent=1 // pred_check_branch
      %29 = sbr.rel (0) target = $region13
    $region12: #{tpu_custom_call.1} parent=1 // pred_region
      _
    $region13: #{tpu_custom_call.1} parent=1 // pred_fallthru
      _
    // Predicated region
    $region14: #{tpu_custom_call.1} parent=1 // pred_check
      _
    $region15: #{tpu_custom_call.1} parent=1 // pred_check_branch
      %31 = sbr.rel (0) target = $region17
    $region16: #{tpu_custom_call.1} parent=1 // pred_region
      %33 = vsyncadd [#allocation6], 0
      %s34 = sshll.u32 %s3, 4
      %s35 = int_to_ptr.hbm [resolvable:$true] %s34
      %s36 = sshll.u32 [#allocation5], 4
      %s37 = int_to_ptr.vmem [resolvable:$true] %s36
      %42 = dma.hbm_to_vmem [thread:$0]  %s35, 1536, %s37, [#allocation6], 128, 128, 8
    $region17: #{tpu_custom_call.1} parent=1 // pred_fallthru
      _
    // Predicated region
    $region18: #{tpu_custom_call.1} parent=1 // pred_check
      _
    $region19: #{tpu_custom_call.1} parent=1 // pred_check_branch
      %44 = sbr.rel (0) target = $region21
    $region20: #{tpu_custom_call.1} parent=1 // pred_region
      _
    $region21: #{tpu_custom_call.1} parent=1 // pred_fallthru
      _
    // Predicated region
    $region22: #{tpu_custom_call.1} parent=1 // pred_check
      _
    $region23: #{tpu_custom_call.1} parent=1 // pred_check_branch
      %46 = sbr.rel (0) target = $region25
    $region24: #{tpu_custom_call.1} parent=1 // pred_region
      %48 = dma.done [#allocation3], 1024
    $region25: #{tpu_custom_call.1} parent=1 // pred_fallthru
      _
    // Predicated region
    $region26: #{tpu_custom_call.1} parent=1 // pred_check
      _
    $region27: #{tpu_custom_call.1} parent=1 // pred_check_branch
      %50 = sbr.rel (0) target = $region29
    $region28: #{tpu_custom_call.1} parent=1 // pred_region
      %52 = dma.done [#allocation6], 1536
    $region29: #{tpu_custom_call.1} parent=1 // pred_fallthru
      _
    %v53 = vld [vmem:[#allocation2] sm:$0xff]
    %v54 = vld [vmem:[#allocation2 + $0x8] sm:$0xff]
    %v55 = vld [vmem:[#allocation2 + $0x10] sm:$0xff]
    %v56 = vld [vmem:[#allocation2 + $0x18] sm:$0xff]
    %v57 = vld [vmem:[#allocation2 + $0x20] sm:$0xff]
    %v58 = vld [vmem:[#allocation2 + $0x28] sm:$0xff]
    %v59 = vld [vmem:[#allocation2 + $0x30] sm:$0xff]
    %v60 = vld [vmem:[#allocation2 + $0x38] sm:$0xff]
    %v61 = vld [vmem:[%s1] sm:$0x3]
    %62 = vadd.xlane.f32.xlu0 %v53
    %v63 = vpop.xlane.xlu0 %62
    %64 = vadd.xlane.f32.xlu0 %v55
    %v65 = vpop.xlane.xlu0 %64
    %66 = vadd.xlane.f32.xlu0 %v57
    %v67 = vpop.xlane.xlu0 %66
    %68 = vadd.xlane.f32.xlu0 %v59
    %v69 = vpop.xlane.xlu0 %68
    %v70 = vmul.f32 %v63, 0.0078125
    %v71 = vmul.f32 %v65, 0.0078125
    %v72 = vmul.f32 %v67, 0.0078125
    %v73 = vmul.f32 %v69, 0.0078125
    %v74 = vsub.f32 %v53, %v70
    %v75 = vsub.f32 %v55, %v71
    %v76 = vsub.f32 %v57, %v72
    %v77 = vsub.f32 %v59, %v73
    %v78 = vmul.f32 %v74, %v74
    %v79 = vmul.f32 %v75, %v75
    %v80 = vmul.f32 %v76, %v76
    %v81 = vmul.f32 %v77, %v77
    %82 = vadd.xlane.f32.xlu0 %v78
    %v83 = vpop.xlane.xlu0 %82
    %84 = vadd.xlane.f32.xlu0 %v79
    %v85 = vpop.xlane.xlu0 %84
    %86 = vadd.xlane.f32.xlu0 %v80
    %v87 = vpop.xlane.xlu0 %86
    %88 = vadd.xlane.f32.xlu0 %v81
    %v89 = vpop.xlane.xlu0 %88
    %v90 = vmul.f32 %v83, 0.0078125
    %v91 = vmul.f32 %v85, 0.0078125
    %v92 = vmul.f32 %v87, 0.0078125
    %v93 = vmul.f32 %v89, 0.0078125
    %v94 = vadd.f32 %v90, 1e-05
    %v95 = vadd.f32 %v91, 1e-05
    %v96 = vadd.f32 %v92, 1e-05
    %v97 = vadd.f32 %v93, 1e-05
    %v98 = vrsqrt.pop %v94
    %v99 = vmul.f32 %v98, %v94
    %v100 = vmul.f32 %v99, %v98
    %v101 = vmul.f32 0.5, %v100
    %v102 = vsub.f32 1.5, %v101
    %v103 = vmul.f32 %v98, %v102
    %vm104 = vweird.f32 %v94
    %vm105 = vweird.f32 %v98
    %vm106 = vmor %vm104, %vm105
    %v107 = vsel %vm106, %v98, %v103
    %v108 = vrsqrt.pop %v95
    %v109 = vmul.f32 %v108, %v95
    %v110 = vmul.f32 %v109, %v108
    %v111 = vmul.f32 0.5, %v110
    %v112 = vsub.f32 1.5, %v111
    %v113 = vmul.f32 %v108, %v112
    %vm114 = vweird.f32 %v95
    %vm115 = vweird.f32 %v108
    %vm116 = vmor %vm114, %vm115
    %v117 = vsel %vm116, %v108, %v113
    %v118 = vrsqrt.pop %v96
    %v119 = vmul.f32 %v118, %v96
    %v120 = vmul.f32 %v119, %v118
    %v121 = vmul.f32 0.5, %v120
    %v122 = vsub.f32 1.5, %v121
    %v123 = vmul.f32 %v118, %v122
    %vm124 = vweird.f32 %v96
    %vm125 = vweird.f32 %v118
    %vm126 = vmor %vm124, %vm125
    %v127 = vsel %vm126, %v118, %v123
    %v128 = vrsqrt.pop %v97
    %v129 = vmul.f32 %v128, %v97
    %v130 = vmul.f32 %v129, %v128
    %v131 = vmul.f32 0.5, %v130
    %v132 = vsub.f32 1.5, %v131
    %v133 = vmul.f32 %v128, %v132
    %vm134 = vweird.f32 %v97
    %vm135 = vweird.f32 %v128
    %vm136 = vmor %vm134, %vm135
    %v137 = vsel %vm136, %v128, %v133
    %v138 = vmul.f32 %v74, %v107
    %v139 = vmul.f32 %v75, %v117
    %v140 = vmul.f32 %v76, %v127
    %v141 = vmul.f32 %v77, %v137
    %142 = vadd.xlane.f32.xlu0 %v54
    %v143 = vpop.xlane.xlu0 %142
    %144 = vadd.xlane.f32.xlu0 %v56
    %v145 = vpop.xlane.xlu0 %144
    %146 = vadd.xlane.f32.xlu0 %v58
    %v147 = vpop.xlane.xlu0 %146
    %148 = vadd.xlane.f32.xlu0 %v60
    %v149 = vpop.xlane.xlu0 %148
    %v150 = vmul.f32 %v143, 0.0078125
    %v151 = vmul.f32 %v145, 0.0078125
    %v152 = vmul.f32 %v147, 0.0078125
    %v153 = vmul.f32 %v149, 0.0078125
    %v154 = vsub.f32 %v54, %v150
    %v155 = vsub.f32 %v56, %v151
    %v156 = vsub.f32 %v58, %v152
    %v157 = vsub.f32 %v60, %v153
    %v158 = vmul.f32 %v154, %v154
    %v159 = vmul.f32 %v155, %v155
    %v160 = vmul.f32 %v156, %v156
    %v161 = vmul.f32 %v157, %v157
    %162 = vadd.xlane.f32.xlu0 %v158
    %v163 = vpop.xlane.xlu0 %162
    %164 = vadd.xlane.f32.xlu0 %v159
    %v165 = vpop.xlane.xlu0 %164
    %166 = vadd.xlane.f32.xlu0 %v160
    %v167 = vpop.xlane.xlu0 %166
    %168 = vadd.xlane.f32.xlu0 %v161
    %v169 = vpop.xlane.xlu0 %168
    %v170 = vmul.f32 %v163, 0.0078125
    %v171 = vmul.f32 %v165, 0.0078125
    %v172 = vmul.f32 %v167, 0.0078125
    %v173 = vmul.f32 %v169, 0.0078125
    %v174 = vadd.f32 %v170, 1e-05
    %v175 = vadd.f32 %v171, 1e-05
    %v176 = vadd.f32 %v172, 1e-05
    %v177 = vadd.f32 %v173, 1e-05
    %v178 = vrsqrt.pop %v174
    %v179 = vmul.f32 %v178, %v174
    %v180 = vmul.f32 %v179, %v178
    %v181 = vmul.f32 0.5, %v180
    %v182 = vsub.f32 1.5, %v181
    %v183 = vmul.f32 %v178, %v182
    %vm184 = vweird.f32 %v174
    %vm185 = vweird.f32 %v178
    %vm186 = vmor %vm184, %vm185
    %v187 = vsel %vm186, %v178, %v183
    %v188 = vrsqrt.pop %v175
    %v189 = vmul.f32 %v188, %v175
    %v190 = vmul.f32 %v189, %v188
    %v191 = vmul.f32 0.5, %v190
    %v192 = vsub.f32 1.5, %v191
    %v193 = vmul.f32 %v188, %v192
    %vm194 = vweird.f32 %v175
    %vm195 = vweird.f32 %v188
    %vm196 = vmor %vm194, %vm195
    %v197 = vsel %vm196, %v188, %v193
    %v198 = vrsqrt.pop %v176
    %v199 = vmul.f32 %v198, %v176
    %v200 = vmul.f32 %v199, %v198
    %v201 = vmul.f32 0.5, %v200
    %v202 = vsub.f32 1.5, %v201
    %v203 = vmul.f32 %v198, %v202
    %vm204 = vweird.f32 %v176
    %vm205 = vweird.f32 %v198
    %vm206 = vmor %vm204, %vm205
    %v207 = vsel %vm206, %v198, %v203
    %v208 = vrsqrt.pop %v177
    %v209 = vmul.f32 %v208, %v177
    %v210 = vmul.f32 %v209, %v208
    %v211 = vmul.f32 0.5, %v210
    %v212 = vsub.f32 1.5, %v211
    %v213 = vmul.f32 %v208, %v212
    %vm214 = vweird.f32 %v177
    %vm215 = vweird.f32 %v208
    %vm216 = vmor %vm214, %vm215
    %v217 = vsel %vm216, %v208, %v213
    %v218 = vmul.f32 %v154, %v187
    %v219 = vmul.f32 %v155, %v197
    %v220 = vmul.f32 %v156, %v207
    %v221 = vmul.f32 %v157, %v217
    %v222 = vlaneseq
    %v223 = vand.u32 %v222, 127
    %v224 = vadd.s32 %v223, 128
    %vm225 = vcmp.lt.s32.totalorder %v223, 0
    %v226 = vsub.s32 0, %v223
    %v227 = vsel %vm225, %v226, %v223
    %v228 = vshrl.u32 %v227, 7
    %v229 = vand.u32 %v227, 127
    %v230 = vsub.s32 0, %v229
    %v231 = vsel %vm225, %v230, %v229
    %vm232 = vcmp.lt.s32.totalorder %v224, 0
    %v233 = vsub.s32 0, %v224
    %v234 = vsel %vm232, %v233, %v224
    %v235 = vshrl.u32 %v234, 7
    %v236 = vand.u32 %v234, 127
    %v237 = vsub.s32 0, %v236
    %v238 = vsel %vm232, %v237, %v236
    %vm239 = vcmp.ge.s32.totalorder %v231, 8
    %vm240 = vcmp.ge.s32.totalorder %v238, 8
    %241 = vrot.lane.b32.xlu0 %v138, 8
    %v242 = vpop.permute.xlu0 %241
    %243 = vrot.lane.b32.xlu0 %v139, 8
    %v244 = vpop.permute.xlu0 %243
    %245 = vrot.lane.b32.xlu0 %v140, 8
    %v246 = vpop.permute.xlu0 %245
    %247 = vrot.lane.b32.xlu0 %v141, 8
    %v248 = vpop.permute.xlu0 %247
    %249 = vrot.lane.b32.xlu0 %v218, 8
    %v250 = vpop.permute.xlu0 %249
    %251 = vrot.lane.b32.xlu0 %v219, 8
    %v252 = vpop.permute.xlu0 %251
    %253 = vrot.lane.b32.xlu0 %v220, 8
    %v254 = vpop.permute.xlu0 %253
    %255 = vrot.lane.b32.xlu0 %v221, 8
    %v256 = vpop.permute.xlu0 %255
    %vm257 = vcmp.lt.s32.totalorder %v223, 8
    %v258 = vsel %vm257, %v242, %v250
    %v259 = vsel %vm257, %v244, %v252
    %v260 = vsel %vm257, %v246, %v254
    %v261 = vsel %vm257, %v248, %v256
    %v262 = vsel %vm257, %v250, %v242
    %v263 = vsel %vm257, %v252, %v244
    %v264 = vsel %vm257, %v254, %v246
    %v265 = vsel %vm257, %v256, %v248
    %v266 = vsel %vm239, 1, 0
    %v267 = vsel %vm240, 1, 0
    %vm268 = vcmp.eq.s32.totalorder %v266, 1
    %vm269 = vcmp.eq.s32.totalorder %v267, 1
    %v270 = vsel %vm268, %v262, 0.0
    %v271 = vsel %vm269, %v258, 0.0
    %v272 = vsel %vm268, %v263, 0.0
    %v273 = vsel %vm269, %v259, 0.0
    %v274 = vsel %vm268, %v264, 0.0
    %v275 = vsel %vm269, %v260, 0.0
    %v276 = vsel %vm268, %v265, 0.0
    %v277 = vsel %vm269, %v261, 0.0
    %vm278 = vcmp.lt.s32.totalorder %v231, 120
    %vm279 = vcmp.lt.s32.totalorder %v238, 120
    %280 = vrot.lane.b32.xlu0 %v138, 120
    %v281 = vpop.permute.xlu0 %280
    %282 = vrot.lane.b32.xlu0 %v139, 120
    %v283 = vpop.permute.xlu0 %282
    %284 = vrot.lane.b32.xlu0 %v140, 120
    %v285 = vpop.permute.xlu0 %284
    %286 = vrot.lane.b32.xlu0 %v141, 120
    %v287 = vpop.permute.xlu0 %286
    %288 = vrot.lane.b32.xlu0 %v218, 120
    %v289 = vpop.permute.xlu0 %288
    %290 = vrot.lane.b32.xlu0 %v219, 120
    %v291 = vpop.permute.xlu0 %290
    %292 = vrot.lane.b32.xlu0 %v220, 120
    %v293 = vpop.permute.xlu0 %292
    %294 = vrot.lane.b32.xlu0 %v221, 120
    %v295 = vpop.permute.xlu0 %294
    %vm296 = vcmp.lt.s32.totalorder %v223, 120
    %v297 = vsel %vm296, %v281, %v289
    %v298 = vsel %vm296, %v283, %v291
    %v299 = vsel %vm296, %v285, %v293
    %v300 = vsel %vm296, %v287, %v295
    %v301 = vsel %vm296, %v289, %v281
    %v302 = vsel %vm296, %v291, %v283
    %v303 = vsel %vm296, %v293, %v285
    %v304 = vsel %vm296, %v295, %v287
    %v305 = vsel %vm278, 1, 0
    %v306 = vsel %vm279, 1, 0
    %vm307 = vcmp.eq.s32.totalorder %v305, 1
    %vm308 = vcmp.eq.s32.totalorder %v306, 1
    %v309 = vsel %vm307, %v297, 0.0
    %v310 = vsel %vm308, %v301, 0.0
    %v311 = vsel %vm307, %v298, 0.0
    %v312 = vsel %vm308, %v302, 0.0
    %v313 = vsel %vm307, %v299, 0.0
    %v314 = vsel %vm308, %v303, 0.0
    %v315 = vsel %vm307, %v300, 0.0
    %v316 = vsel %vm308, %v304, 0.0
    %v317 = vld [vmem:[%s4] sm:$0xff]
    %v318 = vld [vmem:[%s4 + $0x8] sm:$0xff]
    %v319 = vld [vmem:[%s4 + $0x10] sm:$0xff]
    %v320 = vld [vmem:[%s4 + $0x18] sm:$0xff]
    %v321 = vld [vmem:[%s2] sm:$0xff]
    %v322 = vld [vmem:[%s2 + $0x8] sm:$0xff]
    %v323 = vld [vmem:[%s2 + $0x10] sm:$0xff]
    %v324 = vld [vmem:[%s2 + $0x18] sm:$0xff]
    %326 = vset.pattern.permute.xlu0 0
    %327 = vperm.xlu0 %326, %v317
    %v328 = vpop.permute.xlu0 %327
    %331 = vset.pattern.permute.xlu0 0
    %332 = vperm.xlu0 %331, %v318
    %v333 = vpop.permute.xlu0 %332
    %336 = vset.pattern.permute.xlu0 0
    %337 = vperm.xlu0 %336, %v319
    %v338 = vpop.permute.xlu0 %337
    %341 = vset.pattern.permute.xlu0 0
    %342 = vperm.xlu0 %341, %v320
    %v343 = vpop.permute.xlu0 %342
    %vm345 = vcmask 785408
    %v347 = vsel %vm345, %v321, 0
    %v350 = vsel %vm345, %v322, 0
    %v353 = vsel %vm345, %v323, 0
    %v356 = vsel %vm345, %v324, 0
    %358 = vmatpush.msra.mxu0 0.0
    %359 = vmatpush.msra.mxu0 0.0
    %360 = vmatpush.msra.mxu0 0.0
    %361 = vmatpush.msra.mxu0 0.0
    %362 = vmatpush.msra.mxu0 %v315
    %363 = vmatpush.msra.mxu0 %v313
    %364 = vmatpush.msra.mxu0 %v311
    %365 = vmatpush.msra.mxu0 %v309
    %366 = vmatpush.msra.mxu0 %v141
    %367 = vmatpush.msra.mxu0 %v140
    %368 = vmatpush.msra.mxu0 %v139
    %369 = vmatpush.msra.mxu0 %v138
    %370 = vmatpush.msra.mxu0 %v276
    %371 = vmatpush.msra.mxu0 %v274
    %372 = vmatpush.msra.mxu0 %v272
    %373 = vmatpush.msra.mxu0 %v270
    %374 = vmatmul.f32.gmra.mxu0 %v347
    %v375 = vpop.f32.mrf.mxu0
    %v376 = vadd.f32 %v328, %v375
    %377 = vmatmul.f32.gmra.mxu0 %v350
    %v378 = vpop.f32.mrf.mxu0
    %v379 = vadd.f32 %v333, %v378
    %380 = vmatmul.f32.gmra.mxu0 %v353
    %v381 = vpop.f32.mrf.mxu0
    %v382 = vadd.f32 %v338, %v381
    %383 = vmatmul.f32.gmra.mxu0 %v356
    %v384 = vpop.f32.mrf.mxu0
    %v385 = vadd.f32 %v343, %v384
    %386 = vdwg.mxu0
    %387 = vmatpush.msra.mxu0 0.0
    %388 = vmatpush.msra.mxu0 0.0
    %389 = vmatpush.msra.mxu0 0.0
    %390 = vmatpush.msra.mxu0 0.0
    %391 = vmatpush.msra.mxu0 %v316
    %392 = vmatpush.msra.mxu0 %v314
    %393 = vmatpush.msra.mxu0 %v312
    %394 = vmatpush.msra.mxu0 %v310
    %395 = vmatpush.msra.mxu0 %v221
    %396 = vmatpush.msra.mxu0 %v220
    %397 = vmatpush.msra.mxu0 %v219
    %398 = vmatpush.msra.mxu0 %v218
    %399 = vmatpush.msra.mxu0 %v277
    %400 = vmatpush.msra.mxu0 %v275
    %401 = vmatpush.msra.mxu0 %v273
    %402 = vmatpush.msra.mxu0 %v271
    %403 = vmatmul.f32.gmra.mxu0 %v347
    %v404 = vpop.f32.mrf.mxu0
    %v405 = vadd.f32 %v328, %v404
    %406 = vmatmul.f32.gmra.mxu0 %v350
    %v407 = vpop.f32.mrf.mxu0
    %v408 = vadd.f32 %v333, %v407
    %409 = vmatmul.f32.gmra.mxu0 %v353
    %v410 = vpop.f32.mrf.mxu0
    %v411 = vadd.f32 %v338, %v410
    %412 = vmatmul.f32.gmra.mxu0 %v356
    %v413 = vpop.f32.mrf.mxu0
    %v414 = vadd.f32 %v343, %v413
    %415 = vdwg.mxu0
    %v416 = vmax.f32 %v376, 0.0
    %v417 = vmax.f32 %v405, 0.0
    %v418 = vmax.f32 %v379, 0.0
    %v419 = vmax.f32 %v408, 0.0
    %v420 = vmax.f32 %v382, 0.0
    %v421 = vmax.f32 %v411, 0.0
    %v422 = vmax.f32 %v385, 0.0
    %v423 = vmax.f32 %v414, 0.0
    %v424 = vld [vmem:[#allocation5] sm:$0xff]
    %v425 = vld [vmem:[#allocation5 + $0x8] sm:$0xff]
    %v426 = vld [vmem:[#allocation5 + $0x10] sm:$0xff]
    %v427 = vld [vmem:[#allocation5 + $0x18] sm:$0xff]
    %428 = vset.pattern.permute.xlu0 1
    %429 = vperm.xlu0 %428, %v317
    %v430 = vpop.permute.xlu0 %429
    %432 = vset.pattern.permute.xlu0 1
    %433 = vperm.xlu0 %432, %v318
    %v434 = vpop.permute.xlu0 %433
    %436 = vset.pattern.permute.xlu0 1
    %437 = vperm.xlu0 %436, %v319
    %v438 = vpop.permute.xlu0 %437
    %440 = vset.pattern.permute.xlu0 1
    %441 = vperm.xlu0 %440, %v320
    %v442 = vpop.permute.xlu0 %441
    %vm444 = vcmask 261120
    %v446 = vsel %vm444, %v424, 0
    %v449 = vsel %vm444, %v425, 0
    %v452 = vsel %vm444, %v426, 0
    %v455 = vsel %vm444, %v427, 0
    %457 = vmatpush.msra.mxu0 0.0
    %458 = vmatpush.msra.mxu0 0.0
    %459 = vmatpush.msra.mxu0 0.0
    %460 = vmatpush.msra.mxu0 0.0
    %461 = vmatpush.msra.mxu0 0.0
    %462 = vmatpush.msra.mxu0 0.0
    %463 = vmatpush.msra.mxu0 0.0
    %464 = vmatpush.msra.mxu0 0.0
    %465 = vmatpush.msra.mxu0 0.0
    %466 = vmatpush.msra.mxu0 0.0
    %467 = vmatpush.msra.mxu0 0.0
    %468 = vmatpush.msra.mxu0 0.0
    %469 = vmatpush.msra.mxu0 %v422
    %470 = vmatpush.msra.mxu0 %v420
    %471 = vmatpush.msra.mxu0 %v418
    %472 = vmatpush.msra.mxu0 %v416
    %473 = vmatmul.f32.gmra.mxu0 %v446
    %v474 = vpop.f32.mrf.mxu0
    %v475 = vadd.f32 %v430, %v474
    %476 = vmatmul.f32.gmra.mxu0 %v449
    %v477 = vpop.f32.mrf.mxu0
    %v478 = vadd.f32 %v434, %v477
    %479 = vmatmul.f32.gmra.mxu0 %v452
    %v480 = vpop.f32.mrf.mxu0
    %v481 = vadd.f32 %v438, %v480
    %482 = vmatmul.f32.gmra.mxu0 %v455
    %v483 = vpop.f32.mrf.mxu0
    %v484 = vadd.f32 %v442, %v483
    %485 = vdwg.mxu0
    %486 = vmatpush.msra.mxu0 0.0
    %487 = vmatpush.msra.mxu0 0.0
    %488 = vmatpush.msra.mxu0 0.0
    %489 = vmatpush.msra.mxu0 0.0
    %490 = vmatpush.msra.mxu0 0.0
    %491 = vmatpush.msra.mxu0 0.0
    %492 = vmatpush.msra.mxu0 0.0
    %493 = vmatpush.msra.mxu0 0.0
    %494 = vmatpush.msra.mxu0 0.0
    %495 = vmatpush.msra.mxu0 0.0
    %496 = vmatpush.msra.mxu0 0.0
    %497 = vmatpush.msra.mxu0 0.0
    %498 = vmatpush.msra.mxu0 %v423
    %499 = vmatpush.msra.mxu0 %v421
    %500 = vmatpush.msra.mxu0 %v419
    %501 = vmatpush.msra.mxu0 %v417
    %502 = vmatmul.f32.gmra.mxu0 %v446
    %v503 = vpop.f32.mrf.mxu0
    %v504 = vadd.f32 %v430, %v503
    %505 = vmatmul.f32.gmra.mxu0 %v449
    %v506 = vpop.f32.mrf.mxu0
    %v507 = vadd.f32 %v434, %v506
    %508 = vmatmul.f32.gmra.mxu0 %v452
    %v509 = vpop.f32.mrf.mxu0
    %v510 = vadd.f32 %v438, %v509
    %511 = vmatmul.f32.gmra.mxu0 %v455
    %v512 = vpop.f32.mrf.mxu0
    %v513 = vadd.f32 %v442, %v512
    %514 = vdwg.mxu0
    %v516 = vperm.slane %v61, 0
    %v517 = vperm.slane %v61, 1
    %v520 = vmul.f32 %v475, %v516
    %v521 = vmul.f32 %v504, %v517
    %v522 = vmul.f32 %v478, %v516
    %v523 = vmul.f32 %v507, %v517
    %v524 = vmul.f32 %v481, %v516
    %v525 = vmul.f32 %v510, %v517
    %v526 = vmul.f32 %v484, %v516
    %v527 = vmul.f32 %v513, %v517
    %v528 = vadd.f32 %v520, %v138
    %v529 = vadd.f32 %v521, %v218
    %v530 = vadd.f32 %v522, %v139
    %v531 = vadd.f32 %v523, %v219
    %v532 = vadd.f32 %v524, %v140
    %v533 = vadd.f32 %v525, %v220
    %v534 = vadd.f32 %v526, %v141
    %v535 = vadd.f32 %v527, %v221
    %536 = vadd.xlane.f32.xlu0 %v528
    %v537 = vpop.xlane.xlu0 %536
    %538 = vadd.xlane.f32.xlu0 %v530
    %v539 = vpop.xlane.xlu0 %538
    %540 = vadd.xlane.f32.xlu0 %v532
    %v541 = vpop.xlane.xlu0 %540
    %542 = vadd.xlane.f32.xlu0 %v534
    %v543 = vpop.xlane.xlu0 %542
    %v544 = vmul.f32 %v537, 0.0078125
    %v545 = vmul.f32 %v539, 0.0078125
    %v546 = vmul.f32 %v541, 0.0078125
    %v547 = vmul.f32 %v543, 0.0078125
    %v548 = vsub.f32 %v528, %v544
    %v549 = vsub.f32 %v530, %v545
    %v550 = vsub.f32 %v532, %v546
    %v551 = vsub.f32 %v534, %v547
    %v552 = vmul.f32 %v548, %v548
    %v553 = vmul.f32 %v549, %v549
    %v554 = vmul.f32 %v550, %v550
    %v555 = vmul.f32 %v551, %v551
    %556 = vadd.xlane.f32.xlu0 %v552
    %v557 = vpop.xlane.xlu0 %556
    %558 = vadd.xlane.f32.xlu0 %v553
    %v559 = vpop.xlane.xlu0 %558
    %560 = vadd.xlane.f32.xlu0 %v554
    %v561 = vpop.xlane.xlu0 %560
    %562 = vadd.xlane.f32.xlu0 %v555
    %v563 = vpop.xlane.xlu0 %562
    %v564 = vmul.f32 %v557, 0.0078125
    %v565 = vmul.f32 %v559, 0.0078125
    %v566 = vmul.f32 %v561, 0.0078125
    %v567 = vmul.f32 %v563, 0.0078125
    %v568 = vadd.f32 %v564, 1e-05
    %v569 = vadd.f32 %v565, 1e-05
    %v570 = vadd.f32 %v566, 1e-05
    %v571 = vadd.f32 %v567, 1e-05
    %v572 = vrsqrt.pop %v568
    %v573 = vmul.f32 %v572, %v568
    %v574 = vmul.f32 %v573, %v572
    %v575 = vmul.f32 0.5, %v574
    %v576 = vsub.f32 1.5, %v575
    %v577 = vmul.f32 %v572, %v576
    %vm578 = vweird.f32 %v568
    %vm579 = vweird.f32 %v572
    %vm580 = vmor %vm578, %vm579
    %v581 = vsel %vm580, %v572, %v577
    %v582 = vrsqrt.pop %v569
    %v583 = vmul.f32 %v582, %v569
    %v584 = vmul.f32 %v583, %v582
    %v585 = vmul.f32 0.5, %v584
    %v586 = vsub.f32 1.5, %v585
    %v587 = vmul.f32 %v582, %v586
    %vm588 = vweird.f32 %v569
    %vm589 = vweird.f32 %v582
    %vm590 = vmor %vm588, %vm589
    %v591 = vsel %vm590, %v582, %v587
    %v592 = vrsqrt.pop %v570
    %v593 = vmul.f32 %v592, %v570
    %v594 = vmul.f32 %v593, %v592
    %v595 = vmul.f32 0.5, %v594
    %v596 = vsub.f32 1.5, %v595
    %v597 = vmul.f32 %v592, %v596
    %vm598 = vweird.f32 %v570
    %vm599 = vweird.f32 %v592
    %vm600 = vmor %vm598, %vm599
    %v601 = vsel %vm600, %v592, %v597
    %v602 = vrsqrt.pop %v571
    %v603 = vmul.f32 %v602, %v571
    %v604 = vmul.f32 %v603, %v602
    %v605 = vmul.f32 0.5, %v604
    %v606 = vsub.f32 1.5, %v605
    %v607 = vmul.f32 %v602, %v606
    %vm608 = vweird.f32 %v571
    %vm609 = vweird.f32 %v602
    %vm610 = vmor %vm608, %vm609
    %v611 = vsel %vm610, %v602, %v607
    %v612 = vmul.f32 %v548, %v581
    %v613 = vmul.f32 %v549, %v591
    %v614 = vmul.f32 %v550, %v601
    %v615 = vmul.f32 %v551, %v611
    %616 = vadd.xlane.f32.xlu0 %v529
    %v617 = vpop.xlane.xlu0 %616
    %618 = vadd.xlane.f32.xlu0 %v531
    %v619 = vpop.xlane.xlu0 %618
    %620 = vadd.xlane.f32.xlu0 %v533
    %v621 = vpop.xlane.xlu0 %620
    %622 = vadd.xlane.f32.xlu0 %v535
    %v623 = vpop.xlane.xlu0 %622
    %v624 = vmul.f32 %v617, 0.0078125
    %v625 = vmul.f32 %v619, 0.0078125
    %v626 = vmul.f32 %v621, 0.0078125
    %v627 = vmul.f32 %v623, 0.0078125
    %v628 = vsub.f32 %v529, %v624
    %v629 = vsub.f32 %v531, %v625
    %v630 = vsub.f32 %v533, %v626
    %v631 = vsub.f32 %v535, %v627
    %v632 = vmul.f32 %v628, %v628
    %v633 = vmul.f32 %v629, %v629
    %v634 = vmul.f32 %v630, %v630
    %v635 = vmul.f32 %v631, %v631
    %636 = vadd.xlane.f32.xlu0 %v632
    %v637 = vpop.xlane.xlu0 %636
    %638 = vadd.xlane.f32.xlu0 %v633
    %v639 = vpop.xlane.xlu0 %638
    %640 = vadd.xlane.f32.xlu0 %v634
    %v641 = vpop.xlane.xlu0 %640
    %642 = vadd.xlane.f32.xlu0 %v635
    %v643 = vpop.xlane.xlu0 %642
    %v644 = vmul.f32 %v637, 0.0078125
    %v645 = vmul.f32 %v639, 0.0078125
    %v646 = vmul.f32 %v641, 0.0078125
    %v647 = vmul.f32 %v643, 0.0078125
    %v648 = vadd.f32 %v644, 1e-05
    %v649 = vadd.f32 %v645, 1e-05
    %v650 = vadd.f32 %v646, 1e-05
    %v651 = vadd.f32 %v647, 1e-05
    %v652 = vrsqrt.pop %v648
    %v653 = vmul.f32 %v652, %v648
    %v654 = vmul.f32 %v653, %v652
    %v655 = vmul.f32 0.5, %v654
    %v656 = vsub.f32 1.5, %v655
    %v657 = vmul.f32 %v652, %v656
    %vm658 = vweird.f32 %v648
    %vm659 = vweird.f32 %v652
    %vm660 = vmor %vm658, %vm659
    %v661 = vsel %vm660, %v652, %v657
    %v662 = vrsqrt.pop %v649
    %v663 = vmul.f32 %v662, %v649
    %v664 = vmul.f32 %v663, %v662
    %v665 = vmul.f32 0.5, %v664
    %v666 = vsub.f32 1.5, %v665
    %v667 = vmul.f32 %v662, %v666
    %vm668 = vweird.f32 %v649
    %vm669 = vweird.f32 %v662
    %vm670 = vmor %vm668, %vm669
    %v671 = vsel %vm670, %v662, %v667
    %v672 = vrsqrt.pop %v650
    %v673 = vmul.f32 %v672, %v650
    %v674 = vmul.f32 %v673, %v672
    %v675 = vmul.f32 0.5, %v674
    %v676 = vsub.f32 1.5, %v675
    %v677 = vmul.f32 %v672, %v676
    %vm678 = vweird.f32 %v650
    %vm679 = vweird.f32 %v672
    %vm680 = vmor %vm678, %vm679
    %v681 = vsel %vm680, %v672, %v677
    %v682 = vrsqrt.pop %v651
    %v683 = vmul.f32 %v682, %v651
    %v684 = vmul.f32 %v683, %v682
    %v685 = vmul.f32 0.5, %v684
    %v686 = vsub.f32 1.5, %v685
    %v687 = vmul.f32 %v682, %v686
    %vm688 = vweird.f32 %v651
    %vm689 = vweird.f32 %v682
    %vm690 = vmor %vm688, %vm689
    %v691 = vsel %vm690, %v682, %v687
    %v692 = vmul.f32 %v628, %v661
    %v693 = vmul.f32 %v629, %v671
    %v694 = vmul.f32 %v630, %v681
    %v695 = vmul.f32 %v631, %v691
    %s696 = scalar_lea.vmem [#allocation5], 32
    %v697 = vld [vmem:[%s696] sm:$0xff]
    %v698 = vld [vmem:[%s696 + $0x8] sm:$0xff]
    %v699 = vld [vmem:[%s696 + $0x10] sm:$0xff]
    %v700 = vld [vmem:[%s696 + $0x18] sm:$0xff]
    %701 = vset.pattern.permute.xlu0 2
    %702 = vperm.xlu0 %701, %v317
    %v703 = vpop.permute.xlu0 %702
    %705 = vset.pattern.permute.xlu0 2
    %706 = vperm.xlu0 %705, %v318
    %v707 = vpop.permute.xlu0 %706
    %709 = vset.pattern.permute.xlu0 2
    %710 = vperm.xlu0 %709, %v319
    %v711 = vpop.permute.xlu0 %710
    %713 = vset.pattern.permute.xlu0 2
    %714 = vperm.xlu0 %713, %v320
    %v715 = vpop.permute.xlu0 %714
    %v718 = vsel %vm444, %v697, 0
    %v721 = vsel %vm444, %v698, 0
    %v724 = vsel %vm444, %v699, 0
    %v727 = vsel %vm444, %v700, 0
    %729 = vmatpush.msra.mxu0 0.0
    %730 = vmatpush.msra.mxu0 0.0
    %731 = vmatpush.msra.mxu0 0.0
    %732 = vmatpush.msra.mxu0 0.0
    %733 = vmatpush.msra.mxu0 0.0
    %734 = vmatpush.msra.mxu0 0.0
    %735 = vmatpush.msra.mxu0 0.0
    %736 = vmatpush.msra.mxu0 0.0
    %737 = vmatpush.msra.mxu0 0.0
    %738 = vmatpush.msra.mxu0 0.0
    %739 = vmatpush.msra.mxu0 0.0
    %740 = vmatpush.msra.mxu0 0.0
    %741 = vmatpush.msra.mxu0 %v615
    %742 = vmatpush.msra.mxu0 %v614
    %743 = vmatpush.msra.mxu0 %v613
    %744 = vmatpush.msra.mxu0 %v612
    %745 = vmatmul.f32.gmra.mxu0 %v718
    %v746 = vpop.f32.mrf.mxu0
    %v747 = vadd.f32 %v703, %v746
    %748 = vmatmul.f32.gmra.mxu0 %v721
    %v749 = vpop.f32.mrf.mxu0
    %v750 = vadd.f32 %v707, %v749
    %751 = vmatmul.f32.gmra.mxu0 %v724
    %v752 = vpop.f32.mrf.mxu0
    %v753 = vadd.f32 %v711, %v752
    %754 = vmatmul.f32.gmra.mxu0 %v727
    %v755 = vpop.f32.mrf.mxu0
    %v756 = vadd.f32 %v715, %v755
    %757 = vdwg.mxu0
    %758 = vmatpush.msra.mxu0 0.0
    %759 = vmatpush.msra.mxu0 0.0
    %760 = vmatpush.msra.mxu0 0.0
    %761 = vmatpush.msra.mxu0 0.0
    %762 = vmatpush.msra.mxu0 0.0
    %763 = vmatpush.msra.mxu0 0.0
    %764 = vmatpush.msra.mxu0 0.0
    %765 = vmatpush.msra.mxu0 0.0
    %766 = vmatpush.msra.mxu0 0.0
    %767 = vmatpush.msra.mxu0 0.0
    %768 = vmatpush.msra.mxu0 0.0
    %769 = vmatpush.msra.mxu0 0.0
    %770 = vmatpush.msra.mxu0 %v695
    %771 = vmatpush.msra.mxu0 %v694
    %772 = vmatpush.msra.mxu0 %v693
    %773 = vmatpush.msra.mxu0 %v692
    %774 = vmatmul.f32.gmra.mxu0 %v718
    %v775 = vpop.f32.mrf.mxu0
    %v776 = vadd.f32 %v703, %v775
    %777 = vmatmul.f32.gmra.mxu0 %v721
    %v778 = vpop.f32.mrf.mxu0
    %v779 = vadd.f32 %v707, %v778
    %780 = vmatmul.f32.gmra.mxu0 %v724
    %v781 = vpop.f32.mrf.mxu0
    %v782 = vadd.f32 %v711, %v781
    %783 = vmatmul.f32.gmra.mxu0 %v727
    %v784 = vpop.f32.mrf.mxu0
    %v785 = vadd.f32 %v715, %v784
    %786 = vdwg.mxu0
    %v787 = vxor.u32 %v747, 2147483648
    %v788 = vxor.u32 %v776, 2147483648
    %v789 = vxor.u32 %v750, 2147483648
    %v790 = vxor.u32 %v779, 2147483648
    %v791 = vxor.u32 %v753, 2147483648
    %v792 = vxor.u32 %v782, 2147483648
    %v793 = vxor.u32 %v756, 2147483648
    %v794 = vxor.u32 %v785, 2147483648
    %v795 = vmul.f32 %v787, 1.442695
    %v796 = vpow.pop %v795
    %v797 = vmul.f32 %v788, 1.442695
    %v798 = vpow.pop %v797
    %v799 = vmul.f32 %v789, 1.442695
    %v800 = vpow.pop %v799
    %v801 = vmul.f32 %v790, 1.442695
    %v802 = vpow.pop %v801
    %v803 = vmul.f32 %v791, 1.442695
    %v804 = vpow.pop %v803
    %v805 = vmul.f32 %v792, 1.442695
    %v806 = vpow.pop %v805
    %v807 = vmul.f32 %v793, 1.442695
    %v808 = vpow.pop %v807
    %v809 = vmul.f32 %v794, 1.442695
    %v810 = vpow.pop %v809
    %v811 = vadd.f32 %v796, 1.0
    %v812 = vadd.f32 %v798, 1.0
    %v813 = vadd.f32 %v800, 1.0
    %v814 = vadd.f32 %v802, 1.0
    %v815 = vadd.f32 %v804, 1.0
    %v816 = vadd.f32 %v806, 1.0
    %v817 = vadd.f32 %v808, 1.0
    %v818 = vadd.f32 %v810, 1.0
    %v819 = vrcp.pop %v811
    %v820 = vmul.f32 %v811, %v819
    %v821 = vsub.f32 1.0, %v820
    %v822 = vmul.f32 %v819, %v821
    %v823 = vadd.f32 %v819, %v822
    %vm824 = vweird.f32 %v811
    %vm825 = vweird.f32 %v819
    %vm826 = vmor %vm824, %vm825
    %v827 = vsel %vm826, %v819, %v823
    %v828 = vand.u32 2147483647, %v811
    %vm829 = vcmp.eq.f32.partialorder %v828, 8.507059e+37
    %v830 = vand.u32 %v811, 2147483648
    %v831 = vor.u32 1.1754944e-38, %v830
    %v832 = vsel %vm829, %v831, %v827
    %v833 = vmul.f32 1.0, %v832
    %v834 = vrcp.pop %v812
    %v835 = vmul.f32 %v812, %v834
    %v836 = vsub.f32 1.0, %v835
    %v837 = vmul.f32 %v834, %v836
    %v838 = vadd.f32 %v834, %v837
    %vm839 = vweird.f32 %v812
    %vm840 = vweird.f32 %v834
    %vm841 = vmor %vm839, %vm840
    %v842 = vsel %vm841, %v834, %v838
    %v843 = vand.u32 2147483647, %v812
    %vm844 = vcmp.eq.f32.partialorder %v843, 8.507059e+37
    %v845 = vand.u32 %v812, 2147483648
    %v846 = vor.u32 1.1754944e-38, %v845
    %v847 = vsel %vm844, %v846, %v842
    %v848 = vmul.f32 1.0, %v847
    %v849 = vrcp.pop %v813
    %v850 = vmul.f32 %v813, %v849
    %v851 = vsub.f32 1.0, %v850
    %v852 = vmul.f32 %v849, %v851
    %v853 = vadd.f32 %v849, %v852
    %vm854 = vweird.f32 %v813
    %vm855 = vweird.f32 %v849
    %vm856 = vmor %vm854, %vm855
    %v857 = vsel %vm856, %v849, %v853
    %v858 = vand.u32 2147483647, %v813
    %vm859 = vcmp.eq.f32.partialorder %v858, 8.507059e+37
    %v860 = vand.u32 %v813, 2147483648
    %v861 = vor.u32 1.1754944e-38, %v860
    %v862 = vsel %vm859, %v861, %v857
    %v863 = vmul.f32 1.0, %v862
    %v864 = vrcp.pop %v814
    %v865 = vmul.f32 %v814, %v864
    %v866 = vsub.f32 1.0, %v865
    %v867 = vmul.f32 %v864, %v866
    %v868 = vadd.f32 %v864, %v867
    %vm869 = vweird.f32 %v814
    %vm870 = vweird.f32 %v864
    %vm871 = vmor %vm869, %vm870
    %v872 = vsel %vm871, %v864, %v868
    %v873 = vand.u32 2147483647, %v814
    %vm874 = vcmp.eq.f32.partialorder %v873, 8.507059e+37
    %v875 = vand.u32 %v814, 2147483648
    %v876 = vor.u32 1.1754944e-38, %v875
    %v877 = vsel %vm874, %v876, %v872
    %v878 = vmul.f32 1.0, %v877
    %v879 = vrcp.pop %v815
    %v880 = vmul.f32 %v815, %v879
    %v881 = vsub.f32 1.0, %v880
    %v882 = vmul.f32 %v879, %v881
    %v883 = vadd.f32 %v879, %v882
    %vm884 = vweird.f32 %v815
    %vm885 = vweird.f32 %v879
    %vm886 = vmor %vm884, %vm885
    %v887 = vsel %vm886, %v879, %v883
    %v888 = vand.u32 2147483647, %v815
    %vm889 = vcmp.eq.f32.partialorder %v888, 8.507059e+37
    %v890 = vand.u32 %v815, 2147483648
    %v891 = vor.u32 1.1754944e-38, %v890
    %v892 = vsel %vm889, %v891, %v887
    %v893 = vmul.f32 1.0, %v892
    %v894 = vrcp.pop %v816
    %v895 = vmul.f32 %v816, %v894
    %v896 = vsub.f32 1.0, %v895
    %v897 = vmul.f32 %v894, %v896
    %v898 = vadd.f32 %v894, %v897
    %vm899 = vweird.f32 %v816
    %vm900 = vweird.f32 %v894
    %vm901 = vmor %vm899, %vm900
    %v902 = vsel %vm901, %v894, %v898
    %v903 = vand.u32 2147483647, %v816
    %vm904 = vcmp.eq.f32.partialorder %v903, 8.507059e+37
    %v905 = vand.u32 %v816, 2147483648
    %v906 = vor.u32 1.1754944e-38, %v905
    %v907 = vsel %vm904, %v906, %v902
    %v908 = vmul.f32 1.0, %v907
    %v909 = vrcp.pop %v817
    %v910 = vmul.f32 %v817, %v909
    %v911 = vsub.f32 1.0, %v910
    %v912 = vmul.f32 %v909, %v911
    %v913 = vadd.f32 %v909, %v912
    %vm914 = vweird.f32 %v817
    %vm915 = vweird.f32 %v909
    %vm916 = vmor %vm914, %vm915
    %v917 = vsel %vm916, %v909, %v913
    %v918 = vand.u32 2147483647, %v817
    %vm919 = vcmp.eq.f32.partialorder %v918, 8.507059e+37
    %v920 = vand.u32 %v817, 2147483648
    %v921 = vor.u32 1.1754944e-38, %v920
    %v922 = vsel %vm919, %v921, %v917
    %v923 = vmul.f32 1.0, %v922
    %v924 = vrcp.pop %v818
    %v925 = vmul.f32 %v818, %v924
    %v926 = vsub.f32 1.0, %v925
    %v927 = vmul.f32 %v924, %v926
    %v928 = vadd.f32 %v924, %v927
    %vm929 = vweird.f32 %v818
    %vm930 = vweird.f32 %v924
    %vm931 = vmor %vm929, %vm930
    %v932 = vsel %vm931, %v924, %v928
    %v933 = vand.u32 2147483647, %v818
    %vm934 = vcmp.eq.f32.partialorder %v933, 8.507059e+37
    %v935 = vand.u32 %v818, 2147483648
    %v936 = vor.u32 1.1754944e-38, %v935
    %v937 = vsel %vm934, %v936, %v932
    %v938 = vmul.f32 1.0, %v937
    %v939 = vmul.f32 %v747, %v833
    %v940 = vmul.f32 %v776, %v848
    %v941 = vmul.f32 %v750, %v863
    %v942 = vmul.f32 %v779, %v878
    %v943 = vmul.f32 %v753, %v893
    %v944 = vmul.f32 %v782, %v908
    %v945 = vmul.f32 %v756, %v923
    %v946 = vmul.f32 %v785, %v938
    %s947 = scalar_lea.vmem [#allocation5], 64
    %v948 = vld [vmem:[%s947] sm:$0xff]
    %v949 = vld [vmem:[%s947 + $0x8] sm:$0xff]
    %v950 = vld [vmem:[%s947 + $0x10] sm:$0xff]
    %v951 = vld [vmem:[%s947 + $0x18] sm:$0xff]
    %952 = vset.pattern.permute.xlu0 3
    %953 = vperm.xlu0 %952, %v317
    %v954 = vpop.permute.xlu0 %953
    %956 = vset.pattern.permute.xlu0 3
    %957 = vperm.xlu0 %956, %v318
    %v958 = vpop.permute.xlu0 %957
    %960 = vset.pattern.permute.xlu0 3
    %961 = vperm.xlu0 %960, %v319
    %v962 = vpop.permute.xlu0 %961
    %964 = vset.pattern.permute.xlu0 3
    %965 = vperm.xlu0 %964, %v320
    %v966 = vpop.permute.xlu0 %965
    %v969 = vsel %vm444, %v948, 0
    %v972 = vsel %vm444, %v949, 0
    %v975 = vsel %vm444, %v950, 0
    %v978 = vsel %vm444, %v951, 0
    %980 = vmatpush.msra.mxu0 0.0
    %981 = vmatpush.msra.mxu0 0.0
    %982 = vmatpush.msra.mxu0 0.0
    %983 = vmatpush.msra.mxu0 0.0
    %984 = vmatpush.msra.mxu0 0.0
    %985 = vmatpush.msra.mxu0 0.0
    %986 = vmatpush.msra.mxu0 0.0
    %987 = vmatpush.msra.mxu0 0.0
    %988 = vmatpush.msra.mxu0 0.0
    %989 = vmatpush.msra.mxu0 0.0
    %990 = vmatpush.msra.mxu0 0.0
    %991 = vmatpush.msra.mxu0 0.0
    %992 = vmatpush.msra.mxu0 %v945
    %993 = vmatpush.msra.mxu0 %v943
    %994 = vmatpush.msra.mxu0 %v941
    %995 = vmatpush.msra.mxu0 %v939
    %996 = vmatmul.f32.gmra.mxu0 %v969
    %v997 = vpop.f32.mrf.mxu0
    %v998 = vadd.f32 %v954, %v997
    %999 = vmatmul.f32.gmra.mxu0 %v972
    %v1000 = vpop.f32.mrf.mxu0
    %v1001 = vadd.f32 %v958, %v1000
    %1002 = vmatmul.f32.gmra.mxu0 %v975
    %v1003 = vpop.f32.mrf.mxu0
    %v1004 = vadd.f32 %v962, %v1003
    %1005 = vmatmul.f32.gmra.mxu0 %v978
    %v1006 = vpop.f32.mrf.mxu0
    %v1007 = vadd.f32 %v966, %v1006
    %1008 = vdwg.mxu0
    %1009 = vmatpush.msra.mxu0 0.0
    %1010 = vmatpush.msra.mxu0 0.0
    %1011 = vmatpush.msra.mxu0 0.0
    %1012 = vmatpush.msra.mxu0 0.0
    %1013 = vmatpush.msra.mxu0 0.0
    %1014 = vmatpush.msra.mxu0 0.0
    %1015 = vmatpush.msra.mxu0 0.0
    %1016 = vmatpush.msra.mxu0 0.0
    %1017 = vmatpush.msra.mxu0 0.0
    %1018 = vmatpush.msra.mxu0 0.0
    %1019 = vmatpush.msra.mxu0 0.0
    %1020 = vmatpush.msra.mxu0 0.0
    %1021 = vmatpush.msra.mxu0 %v946
    %1022 = vmatpush.msra.mxu0 %v944
    %1023 = vmatpush.msra.mxu0 %v942
    %1024 = vmatpush.msra.mxu0 %v940
    %1025 = vmatmul.f32.gmra.mxu0 %v969
    %v1026 = vpop.f32.mrf.mxu0
    %v1027 = vadd.f32 %v954, %v1026
    %1028 = vmatmul.f32.gmra.mxu0 %v972
    %v1029 = vpop.f32.mrf.mxu0
    %v1030 = vadd.f32 %v958, %v1029
    %1031 = vmatmul.f32.gmra.mxu0 %v975
    %v1032 = vpop.f32.mrf.mxu0
    %v1033 = vadd.f32 %v962, %v1032
    %1034 = vmatmul.f32.gmra.mxu0 %v978
    %v1035 = vpop.f32.mrf.mxu0
    %v1036 = vadd.f32 %v966, %v1035
    %1037 = vdwg.mxu0
    %v1038 = vadd.f32 %v998, %v528
    %v1039 = vadd.f32 %v1027, %v529
    %v1040 = vadd.f32 %v1001, %v530
    %v1041 = vadd.f32 %v1030, %v531
    %v1042 = vadd.f32 %v1004, %v532
    %v1043 = vadd.f32 %v1033, %v533
    %v1044 = vadd.f32 %v1007, %v534
    %v1045 = vadd.f32 %v1036, %v535
    %v1046 = vmul.f32 %v1038, %v516
    %v1047 = vmul.f32 %v1039, %v517
    %v1048 = vmul.f32 %v1040, %v516
    %v1049 = vmul.f32 %v1041, %v517
    %v1050 = vmul.f32 %v1042, %v516
    %v1051 = vmul.f32 %v1043, %v517
    %v1052 = vmul.f32 %v1044, %v516
    %v1053 = vmul.f32 %v1045, %v517
    %1054 = vst [vmem:[#allocation7] sm:$0xff] %v1046
    %1055 = vst [vmem:[#allocation7 + $0x8] sm:$0xff] %v1047
    %1056 = vst [vmem:[#allocation7 + $0x10] sm:$0xff] %v1048
    %1057 = vst [vmem:[#allocation7 + $0x18] sm:$0xff] %v1049
    %1058 = vst [vmem:[#allocation7 + $0x20] sm:$0xff] %v1050
    %1059 = vst [vmem:[#allocation7 + $0x28] sm:$0xff] %v1051
    %1060 = vst [vmem:[#allocation7 + $0x30] sm:$0xff] %v1052
    %1061 = vst [vmem:[#allocation7 + $0x38] sm:$0xff] %v1053
    // Predicated region
    $region30: #{tpu_custom_call.1} parent=1 // pred_check
      _
    $region31: #{tpu_custom_call.1} parent=1 // pred_check_branch
      %1063 = sbr.rel (0) target = $region33
    $region32: #{tpu_custom_call.1} parent=1 // pred_region
      %1065 = vsyncadd [#allocation4], 0
      %s1066 = sshll.u32 [#allocation7], 4
      %s1067 = int_to_ptr.vmem [resolvable:$true] %s1066
      %s1068 = sshll.u32 %s5, 4
      %s1069 = int_to_ptr.hbm [resolvable:$true] %s1068
      %1074 = dma.vmem_to_hbm [thread:$0]  %s1067, 1024, %s1069, [#allocation4], 256, 256, 16
    $region33: #{tpu_custom_call.1} parent=1 // pred_fallthru
      _
    // Predicated region
    $region34: #{tpu_custom_call.1} parent=1 // pred_check
      _
    $region35: #{tpu_custom_call.1} parent=1 // pred_check_branch
      %1076 = sbr.rel (0) target = $region37
    $region36: #{tpu_custom_call.1} parent=1 // pred_region
      %1078 = dma.done [#allocation4], 1024
    $region37: #{tpu_custom_call.1} parent=1 // pred_fallthru
      _
    %1079 = vsyncpa [#allocation3], 1
    %1080 = vsyncpa [#allocation6], 1
    %1081 = vsyncpa [#allocation4], 1

</llo_original>
